<compile_context>
chip_gen: v5e
topology: v5e:2x2
jax: 0.10.0
libtpu: 0.0.40
codegen_flags: <defaults>
</compile_context>

<pallas_src>
import jax
import jax.numpy as jnp
from jax.experimental import pallas as pl
from jax.experimental.pallas import tpu as pltpu

_LANES = 128   # dense lane width for the flattened spatial dim
_NBUF = 4      # manual pipeline depth for per-row gather DMAs (review: Buffered(4))


def _gather_accumulate(k, pred_acc, row, c_k, lane_iota, k_iota):
    """Add keypoint k's gathered prediction column into the dense [C, K] accumulator.

    row      : [C, Wl] f32  spatial row holding the prediction at lane c_k
    c_k      : scalar  i32  lane (column) of the gathered index
    pred_acc : [C, K]  f32
    """
    sel = (lane_iota == c_k).astype(jnp.float32)                   # [1, Wl] one-hot
    pred_col = jnp.sum(row * sel, axis=1, keepdims=True)           # [C, 1]  gathered values
    k_hot = (k_iota == k).astype(jnp.float32)                      # [1, K]
    return pred_acc + pred_col * k_hot                             # [C, K]


def _finalize(pred_acc, tgt_ref, out_ref):
    """One dense |pred - target| pass over the gathered [C, K] values -> [1, K] sums."""
    diff = jnp.abs(pred_acc - tgt_ref[...].astype(jnp.float32))    # [C, K]
    out_ref[...] = jnp.sum(diff, axis=0, keepdims=True)            # [1, K] per-keypoint sums


def _l1_stream_kernel(r_ref, c_ref, feat_ref, tgt_ref, out_ref):
    """Small-map path (Hl <= K): whole [C, Hl, 128] map is VMEM-resident per batch step."""
    b = pl.program_id(0)
    C, _, Wl = feat_ref.shape
    K = tgt_ref.shape[1]
    # Hoisted once per grid step (JAX does not CSE broadcasts inside the loop).
    lane_iota = jax.lax.broadcasted_iota(jnp.int32, (1, Wl), 1)
    k_iota = jax.lax.broadcasted_iota(jnp.int32, (1, K), 1)

    def body(k, pred_acc):
        row = feat_ref[:, pl.ds(r_ref[b, k], 1), :][:, 0, :].astype(jnp.float32)  # [C, Wl]
        return _gather_accumulate(k, pred_acc, row, c_ref[b, k], lane_iota, k_iota)

    pred = jax.lax.fori_loop(0, K, body, jnp.zeros((C, K), jnp.float32),
                             unroll=min(8, K))
    _finalize(pred, tgt_ref, out_ref)


def _l1_gather_kernel(r_ref, c_ref, feat_hbm, tgt_ref, out_ref, buf, sem):
    """Large-map path (Hl > K): feature map stays in HBM; only the K gathered
    [C, 1, 128] rows are DMA'd, multi-buffered against per-keypoint compute."""
    b = pl.program_id(0)
    C = buf.shape[1]
    Wl = buf.shape[-1]
    K = tgt_ref.shape[1]
    lane_iota = jax.lax.broadcasted_iota(jnp.int32, (1, Wl), 1)
    k_iota = jax.lax.broadcasted_iota(jnp.int32, (1, K), 1)

    def row_copy(k, slot):
        return pltpu.make_async_copy(
            feat_hbm.at[b, :, pl.ds(r_ref[b, k], 1), :],   # strided [C, 1, Wl] row gather
            buf.at[slot],
            sem.at[slot],
        )

    # Prime the pipeline: up to _NBUF - 1 row fetches in flight.
    for i in range(min(_NBUF - 1, K)):
        row_copy(i, i).start()

    def body(k, pred_acc):
        slot = jax.lax.rem(k, _NBUF)
        row_copy(k, slot).wait()

        nxt = k + _NBUF - 1                                 # refill the slot freed by step k-1
        @pl.when(nxt < K)
        def _():
            row_copy(nxt, jax.lax.rem(nxt, _NBUF)).start()

        row = buf[slot][:, 0, :].astype(jnp.float32)        # [C, Wl]
        return _gather_accumulate(k, pred_acc, row, c_ref[b, k], lane_iota, k_iota)

    pred = jax.lax.fori_loop(0, K, body, jnp.zeros((C, K), jnp.float32),
                             unroll=min(8, K))
    _finalize(pred, tgt_ref, out_ref)


def l1_loss(output, mask, ind, target):
    """output: [B, C, H, W]; mask: [B, K]; ind: [B, K] int; target: [B, K, C]."""
    B, C, H, W = output.shape
    K = ind.shape[1]
    HW = H * W

    # Dense 128-wide lane dim; zero-pad flat HW if needed (padded cols never selected).
    Wl = _LANES
    Hl = pl.cdiv(HW, Wl)
    feat = output.reshape(B, C, HW)                      # pure reshape of contiguous NCHW
    if Hl * Wl != HW:
        feat = jnp.pad(feat, ((0, 0), (0, 0), (0, Hl * Wl - HW)))
    feat = feat.reshape(B, C, Hl, Wl)

    # Precompute gather coordinates in the wrapper; scalar-prefetch them into SMEM.
    # (clip guards padded/out-of-range indices; PyTorch's gather would raise instead.)
    idx = jnp.clip(ind.astype(jnp.int32), 0, HW - 1)
    r = (idx // Wl).astype(jnp.int32)                    # sublane row of gathered element
    c = (idx - r * Wl).astype(jnp.int32)                 # lane column of gathered element

    tgt = jnp.transpose(target, (0, 2, 1))               # tiny [B, C, K], K lane-dense

    out_shape = jax.ShapeDtypeStruct((B, 1, K), jnp.float32)
    out_spec = pl.BlockSpec((None, 1, K), lambda b, r_s, c_s: (b, 0, 0))
    tgt_spec = pl.BlockSpec((None, C, K), lambda b, r_s, c_s: (b, 0, 0))
    cparams = pltpu.CompilerParams(dimension_semantics=("parallel",))

    if Hl <= K:
        # Small map: streaming the whole [C, Hl, 128] block costs <= K row fetches.
        per_k = pl.pallas_call(
            _l1_stream_kernel,
            out_shape=out_shape,
            grid_spec=pltpu.PrefetchScalarGridSpec(
                num_scalar_prefetch=2,
                grid=(B,),
                in_specs=[
                    pl.BlockSpec((None, C, Hl, Wl), lambda b, r_s, c_s: (b, 0, 0, 0)),
                    tgt_spec,
                ],
                out_specs=out_spec,
            ),
            compiler_params=cparams,
        )(r, c, feat, tgt)
    else:
        # Large map: feature map stays in HBM; manual multi-buffered per-row gather DMAs.
        per_k = pl.pallas_call(
            _l1_gather_kernel,
            out_shape=out_shape,
            grid_spec=pltpu.PrefetchScalarGridSpec(
                num_scalar_prefetch=2,
                grid=(B,),
                in_specs=[
                    pl.BlockSpec(memory_space=pl.ANY),    # raw HBM ref, no auto-DMA
                    tgt_spec,
                ],
                out_specs=out_spec,
                scratch_shapes=[
                    pltpu.VMEM((_NBUF, C, 1, Wl), feat.dtype),
                    pltpu.SemaphoreType.DMA((_NBUF,)),
                ],
            ),
            compiler_params=cparams,
        )(r, c, feat, tgt)

    # |pred*m - tgt*m| == |m| * |pred - tgt| exactly (any real mask); mean over B*K*C.
    m = jnp.abs(mask.astype(jnp.float32))
    return jnp.sum(per_k.reshape(B, K) * m) / float(B * K * C)


def _l1_loss_ref(output, mask, ind, target):
    """Pure-JAX reference mirroring the PyTorch forward."""
    B, C, H, W = output.shape
    feat = jnp.transpose(output, (0, 2, 3, 1)).reshape(B, H * W, C)
    pred = jnp.take_along_axis(feat, ind[..., None].astype(jnp.int32), axis=1)   # [B, K, C]
    m = mask.astype(jnp.float32)[:, :, None]
    return jnp.mean(jnp.abs(pred * m - target * m))


if __name__ == "__main__":
    key = jax.random.PRNGKey(0)

    # (B, C, H, W, K): 1st exercises the small-map streaming path (Hl <= K),
    # 2nd the per-row gather path (Hl > K), 3rd the HW % 128 != 0 padding path.
    configs = [(2, 4, 16, 16, 8), (2, 4, 32, 64, 8), (1, 3, 10, 10, 5)]

    loss = None
    for cfg in configs:
        B, C, H, W, K = cfg
        key, k1, k2, k3, k4 = jax.random.split(key, 5)
        output = jax.random.normal(k1, (B, C, H, W), jnp.float32)
        target = jax.random.normal(k2, (B, K, C), jnp.float32)
        ind = jax.random.randint(k3, (B, K), 0, H * W, jnp.int32)
        mask = (jax.random.uniform(k4, (B, K)) > 0.3).astype(jnp.int32)

        loss = l1_loss(output, mask, ind, target)
        jax.block_until_ready(loss)

        ref = _l1_loss_ref(output, mask, ind, target)
        got, want = float(loss), float(ref)
        assert abs(got - want) <= 1e-5 * max(1.0, abs(want)), (cfg, got, want)

    print("KERNEL_OK")
</pallas_src>

<mosaic_0001>
module attributes {stable_mosaic.version = 11 : i64} {
  func.func @_l1_stream_kernel(%arg0: i32, %arg1: memref<2x8xi32, #tpu.memory_space<smem>>, %arg2: memref<2x8xi32, #tpu.memory_space<smem>>, %arg3: memref<1x4x2x128xf32, #tpu.memory_space<vmem>>, %arg4: memref<1x4x8xf32, #tpu.memory_space<vmem>>, %arg5: memref<1x1x8xf32, #tpu.memory_space<vmem>>) attributes {dimension_semantics = [#tpu.dimension_semantics<parallel>], iteration_bounds = array<i64: 2>, scalar_prefetch = 2 : i64, scratch_operands = 0 : i64, tpu.core_type = #tpu.core_type<tc>, window_params = [{transform_indices = @transform_0, window_bounds = array<i64: 1, 4, 2, 128>}, {transform_indices = @transform_1, window_bounds = array<i64: 1, 4, 8>}, {transform_indices = @transform_2, window_bounds = array<i64: 1, 1, 8>}]} {
    %0 = tpu.iota {dimensions = array<i32: 1>} : vector<1x128xi32>
    %1 = tpu.iota {dimensions = array<i32: 1>} : vector<1x8xi32>
    %cst = arith.constant 0.000000e+00 : f32
    %2 = vector.broadcast %cst : f32 to vector<4x8xf32>
    %c0_i32 = arith.constant 0 : i32
    %3 = arith.index_cast %arg0 : i32 to index
    %4 = arith.index_cast %c0_i32 : i32 to index
    %5 = memref.load %arg1[%3, %4] : memref<2x8xi32, #tpu.memory_space<smem>>
    %c0 = arith.constant 0 : index
    %c0_0 = arith.constant 0 : index
    %6 = arith.index_cast %5 : i32 to index
    %c0_1 = arith.constant 0 : index
    %7 = vector.load %arg3[%c0, %c0_0, %6, %c0_1] : memref<1x4x2x128xf32, #tpu.memory_space<vmem>>, vector<1x4x1x128xf32>
    %8 = vector.shape_cast %7 : vector<1x4x1x128xf32> to vector<4x1x128xf32>
    %9 = vector.shape_cast %8 : vector<4x1x128xf32> to vector<4x128xf32>
    %10 = arith.index_cast %arg0 : i32 to index
    %11 = arith.index_cast %c0_i32 : i32 to index
    %12 = memref.load %arg2[%10, %11] : memref<2x8xi32, #tpu.memory_space<smem>>
    %13 = vector.broadcast %12 : i32 to vector<1x128xi32>
    %14 = arith.cmpi eq, %0, %13 : vector<1x128xi32>
    %15 = arith.extui %14 : vector<1x128xi1> to vector<1x128xi32>
    %16 = arith.sitofp %15 : vector<1x128xi32> to vector<1x128xf32>
    %17 = vector.broadcast %16 : vector<1x128xf32> to vector<4x128xf32>
    %18 = arith.mulf %9, %17 : vector<4x128xf32>
    %cst_2 = arith.constant dense<0.000000e+00> : vector<4xf32>
    %19 = vector.multi_reduction <add>, %18, %cst_2 [1] : vector<4x128xf32> to vector<4xf32>
    %20 = vector.shape_cast %19 : vector<4xf32> to vector<4x1xf32>
    %21 = vector.broadcast %c0_i32 : i32 to vector<1x8xi32>
    %22 = arith.cmpi eq, %1, %21 : vector<1x8xi32>
    %23 = arith.extui %22 : vector<1x8xi1> to vector<1x8xi32>
    %24 = arith.sitofp %23 : vector<1x8xi32> to vector<1x8xf32>
    %25 = vector.broadcast %20 : vector<4x1xf32> to vector<4x8xf32>
    %26 = vector.broadcast %24 : vector<1x8xf32> to vector<4x8xf32>
    %27 = arith.mulf %25, %26 : vector<4x8xf32>
    %28 = arith.addf %2, %27 : vector<4x8xf32>
    %c1_i32 = arith.constant 1 : i32
    %29 = arith.index_cast %arg0 : i32 to index
    %30 = arith.index_cast %c1_i32 : i32 to index
    %31 = memref.load %arg1[%29, %30] : memref<2x8xi32, #tpu.memory_space<smem>>
    %c0_3 = arith.constant 0 : index
    %c0_4 = arith.constant 0 : index
    %32 = arith.index_cast %31 : i32 to index
    %c0_5 = arith.constant 0 : index
    %33 = vector.load %arg3[%c0_3, %c0_4, %32, %c0_5] : memref<1x4x2x128xf32, #tpu.memory_space<vmem>>, vector<1x4x1x128xf32>
    %34 = vector.shape_cast %33 : vector<1x4x1x128xf32> to vector<4x1x128xf32>
    %35 = vector.shape_cast %34 : vector<4x1x128xf32> to vector<4x128xf32>
    %36 = arith.index_cast %arg0 : i32 to index
    %37 = arith.index_cast %c1_i32 : i32 to index
    %38 = memref.load %arg2[%36, %37] : memref<2x8xi32, #tpu.memory_space<smem>>
    %39 = vector.broadcast %38 : i32 to vector<1x128xi32>
    %40 = arith.cmpi eq, %0, %39 : vector<1x128xi32>
    %41 = arith.extui %40 : vector<1x128xi1> to vector<1x128xi32>
    %42 = arith.sitofp %41 : vector<1x128xi32> to vector<1x128xf32>
    %43 = vector.broadcast %42 : vector<1x128xf32> to vector<4x128xf32>
    %44 = arith.mulf %35, %43 : vector<4x128xf32>
    %cst_6 = arith.constant dense<0.000000e+00> : vector<4xf32>
    %45 = vector.multi_reduction <add>, %44, %cst_6 [1] : vector<4x128xf32> to vector<4xf32>
    %46 = vector.shape_cast %45 : vector<4xf32> to vector<4x1xf32>
    %47 = vector.broadcast %c1_i32 : i32 to vector<1x8xi32>
    %48 = arith.cmpi eq, %1, %47 : vector<1x8xi32>
    %49 = arith.extui %48 : vector<1x8xi1> to vector<1x8xi32>
    %50 = arith.sitofp %49 : vector<1x8xi32> to vector<1x8xf32>
    %51 = vector.broadcast %46 : vector<4x1xf32> to vector<4x8xf32>
    %52 = vector.broadcast %50 : vector<1x8xf32> to vector<4x8xf32>
    %53 = arith.mulf %51, %52 : vector<4x8xf32>
    %54 = arith.addf %28, %53 : vector<4x8xf32>
    %c2_i32 = arith.constant 2 : i32
    %55 = arith.index_cast %arg0 : i32 to index
    %56 = arith.index_cast %c2_i32 : i32 to index
    %57 = memref.load %arg1[%55, %56] : memref<2x8xi32, #tpu.memory_space<smem>>
    %c0_7 = arith.constant 0 : index
    %c0_8 = arith.constant 0 : index
    %58 = arith.index_cast %57 : i32 to index
    %c0_9 = arith.constant 0 : index
    %59 = vector.load %arg3[%c0_7, %c0_8, %58, %c0_9] : memref<1x4x2x128xf32, #tpu.memory_space<vmem>>, vector<1x4x1x128xf32>
    %60 = vector.shape_cast %59 : vector<1x4x1x128xf32> to vector<4x1x128xf32>
    %61 = vector.shape_cast %60 : vector<4x1x128xf32> to vector<4x128xf32>
    %62 = arith.index_cast %arg0 : i32 to index
    %63 = arith.index_cast %c2_i32 : i32 to index
    %64 = memref.load %arg2[%62, %63] : memref<2x8xi32, #tpu.memory_space<smem>>
    %65 = vector.broadcast %64 : i32 to vector<1x128xi32>
    %66 = arith.cmpi eq, %0, %65 : vector<1x128xi32>
    %67 = arith.extui %66 : vector<1x128xi1> to vector<1x128xi32>
    %68 = arith.sitofp %67 : vector<1x128xi32> to vector<1x128xf32>
    %69 = vector.broadcast %68 : vector<1x128xf32> to vector<4x128xf32>
    %70 = arith.mulf %61, %69 : vector<4x128xf32>
    %cst_10 = arith.constant dense<0.000000e+00> : vector<4xf32>
    %71 = vector.multi_reduction <add>, %70, %cst_10 [1] : vector<4x128xf32> to vector<4xf32>
    %72 = vector.shape_cast %71 : vector<4xf32> to vector<4x1xf32>
    %73 = vector.broadcast %c2_i32 : i32 to vector<1x8xi32>
    %74 = arith.cmpi eq, %1, %73 : vector<1x8xi32>
    %75 = arith.extui %74 : vector<1x8xi1> to vector<1x8xi32>
    %76 = arith.sitofp %75 : vector<1x8xi32> to vector<1x8xf32>
    %77 = vector.broadcast %72 : vector<4x1xf32> to vector<4x8xf32>
    %78 = vector.broadcast %76 : vector<1x8xf32> to vector<4x8xf32>
    %79 = arith.mulf %77, %78 : vector<4x8xf32>
    %80 = arith.addf %54, %79 : vector<4x8xf32>
    %c3_i32 = arith.constant 3 : i32
    %81 = arith.index_cast %arg0 : i32 to index
    %82 = arith.index_cast %c3_i32 : i32 to index
    %83 = memref.load %arg1[%81, %82] : memref<2x8xi32, #tpu.memory_space<smem>>
    %c0_11 = arith.constant 0 : index
    %c0_12 = arith.constant 0 : index
    %84 = arith.index_cast %83 : i32 to index
    %c0_13 = arith.constant 0 : index
    %85 = vector.load %arg3[%c0_11, %c0_12, %84, %c0_13] : memref<1x4x2x128xf32, #tpu.memory_space<vmem>>, vector<1x4x1x128xf32>
    %86 = vector.shape_cast %85 : vector<1x4x1x128xf32> to vector<4x1x128xf32>
    %87 = vector.shape_cast %86 : vector<4x1x128xf32> to vector<4x128xf32>
    %88 = arith.index_cast %arg0 : i32 to index
    %89 = arith.index_cast %c3_i32 : i32 to index
    %90 = memref.load %arg2[%88, %89] : memref<2x8xi32, #tpu.memory_space<smem>>
    %91 = vector.broadcast %90 : i32 to vector<1x128xi32>
    %92 = arith.cmpi eq, %0, %91 : vector<1x128xi32>
    %93 = arith.extui %92 : vector<1x128xi1> to vector<1x128xi32>
    %94 = arith.sitofp %93 : vector<1x128xi32> to vector<1x128xf32>
    %95 = vector.broadcast %94 : vector<1x128xf32> to vector<4x128xf32>
    %96 = arith.mulf %87, %95 : vector<4x128xf32>
    %cst_14 = arith.constant dense<0.000000e+00> : vector<4xf32>
    %97 = vector.multi_reduction <add>, %96, %cst_14 [1] : vector<4x128xf32> to vector<4xf32>
    %98 = vector.shape_cast %97 : vector<4xf32> to vector<4x1xf32>
    %99 = vector.broadcast %c3_i32 : i32 to vector<1x8xi32>
    %100 = arith.cmpi eq, %1, %99 : vector<1x8xi32>
    %101 = arith.extui %100 : vector<1x8xi1> to vector<1x8xi32>
    %102 = arith.sitofp %101 : vector<1x8xi32> to vector<1x8xf32>
    %103 = vector.broadcast %98 : vector<4x1xf32> to vector<4x8xf32>
    %104 = vector.broadcast %102 : vector<1x8xf32> to vector<4x8xf32>
    %105 = arith.mulf %103, %104 : vector<4x8xf32>
    %106 = arith.addf %80, %105 : vector<4x8xf32>
    %c4_i32 = arith.constant 4 : i32
    %107 = arith.index_cast %arg0 : i32 to index
    %108 = arith.index_cast %c4_i32 : i32 to index
    %109 = memref.load %arg1[%107, %108] : memref<2x8xi32, #tpu.memory_space<smem>>
    %c0_15 = arith.constant 0 : index
    %c0_16 = arith.constant 0 : index
    %110 = arith.index_cast %109 : i32 to index
    %c0_17 = arith.constant 0 : index
    %111 = vector.load %arg3[%c0_15, %c0_16, %110, %c0_17] : memref<1x4x2x128xf32, #tpu.memory_space<vmem>>, vector<1x4x1x128xf32>
    %112 = vector.shape_cast %111 : vector<1x4x1x128xf32> to vector<4x1x128xf32>
    %113 = vector.shape_cast %112 : vector<4x1x128xf32> to vector<4x128xf32>
    %114 = arith.index_cast %arg0 : i32 to index
    %115 = arith.index_cast %c4_i32 : i32 to index
    %116 = memref.load %arg2[%114, %115] : memref<2x8xi32, #tpu.memory_space<smem>>
    %117 = vector.broadcast %116 : i32 to vector<1x128xi32>
    %118 = arith.cmpi eq, %0, %117 : vector<1x128xi32>
    %119 = arith.extui %118 : vector<1x128xi1> to vector<1x128xi32>
    %120 = arith.sitofp %119 : vector<1x128xi32> to vector<1x128xf32>
    %121 = vector.broadcast %120 : vector<1x128xf32> to vector<4x128xf32>
    %122 = arith.mulf %113, %121 : vector<4x128xf32>
    %cst_18 = arith.constant dense<0.000000e+00> : vector<4xf32>
    %123 = vector.multi_reduction <add>, %122, %cst_18 [1] : vector<4x128xf32> to vector<4xf32>
    %124 = vector.shape_cast %123 : vector<4xf32> to vector<4x1xf32>
    %125 = vector.broadcast %c4_i32 : i32 to vector<1x8xi32>
    %126 = arith.cmpi eq, %1, %125 : vector<1x8xi32>
    %127 = arith.extui %126 : vector<1x8xi1> to vector<1x8xi32>
    %128 = arith.sitofp %127 : vector<1x8xi32> to vector<1x8xf32>
    %129 = vector.broadcast %124 : vector<4x1xf32> to vector<4x8xf32>
    %130 = vector.broadcast %128 : vector<1x8xf32> to vector<4x8xf32>
    %131 = arith.mulf %129, %130 : vector<4x8xf32>
    %132 = arith.addf %106, %131 : vector<4x8xf32>
    %c5_i32 = arith.constant 5 : i32
    %133 = arith.index_cast %arg0 : i32 to index
    %134 = arith.index_cast %c5_i32 : i32 to index
    %135 = memref.load %arg1[%133, %134] : memref<2x8xi32, #tpu.memory_space<smem>>
    %c0_19 = arith.constant 0 : index
    %c0_20 = arith.constant 0 : index
    %136 = arith.index_cast %135 : i32 to index
    %c0_21 = arith.constant 0 : index
    %137 = vector.load %arg3[%c0_19, %c0_20, %136, %c0_21] : memref<1x4x2x128xf32, #tpu.memory_space<vmem>>, vector<1x4x1x128xf32>
    %138 = vector.shape_cast %137 : vector<1x4x1x128xf32> to vector<4x1x128xf32>
    %139 = vector.shape_cast %138 : vector<4x1x128xf32> to vector<4x128xf32>
    %140 = arith.index_cast %arg0 : i32 to index
    %141 = arith.index_cast %c5_i32 : i32 to index
    %142 = memref.load %arg2[%140, %141] : memref<2x8xi32, #tpu.memory_space<smem>>
    %143 = vector.broadcast %142 : i32 to vector<1x128xi32>
    %144 = arith.cmpi eq, %0, %143 : vector<1x128xi32>
    %145 = arith.extui %144 : vector<1x128xi1> to vector<1x128xi32>
    %146 = arith.sitofp %145 : vector<1x128xi32> to vector<1x128xf32>
    %147 = vector.broadcast %146 : vector<1x128xf32> to vector<4x128xf32>
    %148 = arith.mulf %139, %147 : vector<4x128xf32>
    %cst_22 = arith.constant dense<0.000000e+00> : vector<4xf32>
    %149 = vector.multi_reduction <add>, %148, %cst_22 [1] : vector<4x128xf32> to vector<4xf32>
    %150 = vector.shape_cast %149 : vector<4xf32> to vector<4x1xf32>
    %151 = vector.broadcast %c5_i32 : i32 to vector<1x8xi32>
    %152 = arith.cmpi eq, %1, %151 : vector<1x8xi32>
    %153 = arith.extui %152 : vector<1x8xi1> to vector<1x8xi32>
    %154 = arith.sitofp %153 : vector<1x8xi32> to vector<1x8xf32>
    %155 = vector.broadcast %150 : vector<4x1xf32> to vector<4x8xf32>
    %156 = vector.broadcast %154 : vector<1x8xf32> to vector<4x8xf32>
    %157 = arith.mulf %155, %156 : vector<4x8xf32>
    %158 = arith.addf %132, %157 : vector<4x8xf32>
    %c6_i32 = arith.constant 6 : i32
    %159 = arith.index_cast %arg0 : i32 to index
    %160 = arith.index_cast %c6_i32 : i32 to index
    %161 = memref.load %arg1[%159, %160] : memref<2x8xi32, #tpu.memory_space<smem>>
    %c0_23 = arith.constant 0 : index
    %c0_24 = arith.constant 0 : index
    %162 = arith.index_cast %161 : i32 to index
    %c0_25 = arith.constant 0 : index
    %163 = vector.load %arg3[%c0_23, %c0_24, %162, %c0_25] : memref<1x4x2x128xf32, #tpu.memory_space<vmem>>, vector<1x4x1x128xf32>
    %164 = vector.shape_cast %163 : vector<1x4x1x128xf32> to vector<4x1x128xf32>
    %165 = vector.shape_cast %164 : vector<4x1x128xf32> to vector<4x128xf32>
    %166 = arith.index_cast %arg0 : i32 to index
    %167 = arith.index_cast %c6_i32 : i32 to index
    %168 = memref.load %arg2[%166, %167] : memref<2x8xi32, #tpu.memory_space<smem>>
    %169 = vector.broadcast %168 : i32 to vector<1x128xi32>
    %170 = arith.cmpi eq, %0, %169 : vector<1x128xi32>
    %171 = arith.extui %170 : vector<1x128xi1> to vector<1x128xi32>
    %172 = arith.sitofp %171 : vector<1x128xi32> to vector<1x128xf32>
    %173 = vector.broadcast %172 : vector<1x128xf32> to vector<4x128xf32>
    %174 = arith.mulf %165, %173 : vector<4x128xf32>
    %cst_26 = arith.constant dense<0.000000e+00> : vector<4xf32>
    %175 = vector.multi_reduction <add>, %174, %cst_26 [1] : vector<4x128xf32> to vector<4xf32>
    %176 = vector.shape_cast %175 : vector<4xf32> to vector<4x1xf32>
    %177 = vector.broadcast %c6_i32 : i32 to vector<1x8xi32>
    %178 = arith.cmpi eq, %1, %177 : vector<1x8xi32>
    %179 = arith.extui %178 : vector<1x8xi1> to vector<1x8xi32>
    %180 = arith.sitofp %179 : vector<1x8xi32> to vector<1x8xf32>
    %181 = vector.broadcast %176 : vector<4x1xf32> to vector<4x8xf32>
    %182 = vector.broadcast %180 : vector<1x8xf32> to vector<4x8xf32>
    %183 = arith.mulf %181, %182 : vector<4x8xf32>
    %184 = arith.addf %158, %183 : vector<4x8xf32>
    %c7_i32 = arith.constant 7 : i32
    %185 = arith.index_cast %arg0 : i32 to index
    %186 = arith.index_cast %c7_i32 : i32 to index
    %187 = memref.load %arg1[%185, %186] : memref<2x8xi32, #tpu.memory_space<smem>>
    %c0_27 = arith.constant 0 : index
    %c0_28 = arith.constant 0 : index
    %188 = arith.index_cast %187 : i32 to index
    %c0_29 = arith.constant 0 : index
    %189 = vector.load %arg3[%c0_27, %c0_28, %188, %c0_29] : memref<1x4x2x128xf32, #tpu.memory_space<vmem>>, vector<1x4x1x128xf32>
    %190 = vector.shape_cast %189 : vector<1x4x1x128xf32> to vector<4x1x128xf32>
    %191 = vector.shape_cast %190 : vector<4x1x128xf32> to vector<4x128xf32>
    %192 = arith.index_cast %arg0 : i32 to index
    %193 = arith.index_cast %c7_i32 : i32 to index
    %194 = memref.load %arg2[%192, %193] : memref<2x8xi32, #tpu.memory_space<smem>>
    %195 = vector.broadcast %194 : i32 to vector<1x128xi32>
    %196 = arith.cmpi eq, %0, %195 : vector<1x128xi32>
    %197 = arith.extui %196 : vector<1x128xi1> to vector<1x128xi32>
    %198 = arith.sitofp %197 : vector<1x128xi32> to vector<1x128xf32>
    %199 = vector.broadcast %198 : vector<1x128xf32> to vector<4x128xf32>
    %200 = arith.mulf %191, %199 : vector<4x128xf32>
    %cst_30 = arith.constant dense<0.000000e+00> : vector<4xf32>
    %201 = vector.multi_reduction <add>, %200, %cst_30 [1] : vector<4x128xf32> to vector<4xf32>
    %202 = vector.shape_cast %201 : vector<4xf32> to vector<4x1xf32>
    %203 = vector.broadcast %c7_i32 : i32 to vector<1x8xi32>
    %204 = arith.cmpi eq, %1, %203 : vector<1x8xi32>
    %205 = arith.extui %204 : vector<1x8xi1> to vector<1x8xi32>
    %206 = arith.sitofp %205 : vector<1x8xi32> to vector<1x8xf32>
    %207 = vector.broadcast %202 : vector<4x1xf32> to vector<4x8xf32>
    %208 = vector.broadcast %206 : vector<1x8xf32> to vector<4x8xf32>
    %209 = arith.mulf %207, %208 : vector<4x8xf32>
    %210 = arith.addf %184, %209 : vector<4x8xf32>
    %c8_i32 = arith.constant 8 : i32
    %c0_31 = arith.constant 0 : index
    %c0_32 = arith.constant 0 : index
    %c0_33 = arith.constant 0 : index
    %211 = vector.load %arg4[%c0_31, %c0_32, %c0_33] : memref<1x4x8xf32, #tpu.memory_space<vmem>>, vector<1x4x8xf32>
    %212 = vector.shape_cast %211 : vector<1x4x8xf32> to vector<4x8xf32>
    %213 = arith.subf %210, %212 : vector<4x8xf32>
    %214 = math.absf %213 : vector<4x8xf32>
    %cst_34 = arith.constant dense<0.000000e+00> : vector<8xf32>
    %215 = vector.multi_reduction <add>, %214, %cst_34 [0] : vector<4x8xf32> to vector<8xf32>
    %216 = vector.shape_cast %215 : vector<8xf32> to vector<1x8xf32>
    %c0_35 = arith.constant 0 : index
    %c0_36 = arith.constant 0 : index
    %c0_37 = arith.constant 0 : index
    %217 = vector.load %arg5[%c0_35, %c0_36, %c0_37] : memref<1x1x8xf32, #tpu.memory_space<vmem>>, vector<1x1x8xf32>
    %218 = vector.shape_cast %217 : vector<1x1x8xf32> to vector<1x8xf32>
    %219 = vector.shape_cast %216 : vector<1x8xf32> to vector<1x1x8xf32>
    tpu.vector_store %arg5[%c0_35, %c0_36, %c0_37], %219 {strides = array<i32>} : memref<1x1x8xf32, #tpu.memory_space<vmem>>, vector<1x1x8xf32>,
    return
  }
  func.func @transform_0(%arg0: i32, %arg1: memref<2x8xi32, #tpu.memory_space<smem>>, %arg2: memref<2x8xi32, #tpu.memory_space<smem>>) -> (i32, i32, i32, i32) {
    %c0_i32 = arith.constant 0 : i32
    %c0_i32_0 = arith.constant 0 : i32
    %c0_i32_1 = arith.constant 0 : i32
    %c0_i32_2 = arith.constant 0 : i32
    return %arg0, %c0_i32, %c0_i32_0, %c0_i32_1 : i32, i32, i32, i32
  }
  func.func @transform_1(%arg0: i32, %arg1: memref<2x8xi32, #tpu.memory_space<smem>>, %arg2: memref<2x8xi32, #tpu.memory_space<smem>>) -> (i32, i32, i32) {
    %c0_i32 = arith.constant 0 : i32
    %c0_i32_0 = arith.constant 0 : i32
    %c0_i32_1 = arith.constant 0 : i32
    return %arg0, %c0_i32, %c0_i32_0 : i32, i32, i32
  }
  func.func @transform_2(%arg0: i32, %arg1: memref<2x8xi32, #tpu.memory_space<smem>>, %arg2: memref<2x8xi32, #tpu.memory_space<smem>>) -> (i32, i32, i32) {
    %c0_i32 = arith.constant 0 : i32
    %c0_i32_0 = arith.constant 0 : i32
    %c0_i32_1 = arith.constant 0 : i32
    return %arg0, %c0_i32, %c0_i32_0 : i32, i32, i32
  }
}

</mosaic_0001>

<llo_original>
// kernel: tpu_custom_call.1
$region0: #{tpu_custom_call.1}
  #allocation0 [shape = 'u32[]', space=smem, size = 0x4, offset = 0x4, fixed_abs, tag = 'smem constant byte address 0x4 - core index']
  #allocation1 [shape = 'u32[72,128]{1,0:T(1,128)}', space=vmem, size = 0x9000, scoped, tag = 'internal scratch']
  #allocation2 [shape = 's32[1]{0}', space=sflag, size = 0x4, scoped, tag = 'scoped memory for tpu_custom_call.1']
  #allocation3 [shape = 'u8[1024]{0}', space=smem, size = 0x400, scoped, tag = 'prefetched SMEM operand 0']
  #allocation4 [shape = 'u8[1024]{0}', space=smem, size = 0x400, scoped, tag = 'prefetched SMEM operand 1']
  %s0 = inlined_call_operand.hbm [shape: s32[2,8], index: 0, kind: input, shape index: {}]
  %s1 = inlined_call_operand.hbm [shape: s32[2,8], index: 1, kind: input, shape index: {}]
  %s2 = inlined_call_operand.hbm [shape: f32[2,4,2,128], index: 2, kind: input, shape index: {}]
  %s3 = inlined_call_operand.hbm [shape: f32[2,4,8], index: 3, kind: input, shape index: {}]
  %s4 = inlined_call_operand.hbm [shape: f32[2,1,8], index: 4, kind: output, shape index: {}]
  %s5 = sld [smem:[#allocation0]]
  $region49: #{tpu_custom_call.1} parent=0
    _
  %s7 = ssub.s32 1, %s5
  %s8 = scalar_select 0, %s7, %s5
  %s10 = sshll.u32 %s0, 4
  %s11 = int_to_ptr.hbm [resolvable:$true] %s10
  %13 = dma.hbm_to_smem %s11, 32, [#allocation3], [#allocation2]
  %s15 = sshll.u32 %s1, 4
  %s16 = int_to_ptr.hbm [resolvable:$true] %s15
  %18 = dma.hbm_to_smem %s16, 32, [#allocation4], [#allocation2]
  %20 = dma.done [#allocation2], 64
  %21 = sfence
  $region1: #{tpu_custom_call.1} parent=0
    #allocation5 [shape = 'u8[8192]{0}', space=vmem, size = 0x2000, scoped, tag = 'input window, operand 2']
    #allocation6 [shape = 's32[2]{0}', space=sflag, size = 0x8, scoped, tag = 'scoped memory for tpu_custom_call.1']
    #allocation7 [shape = 's32[2]{0}', space=sflag, size = 0x8, scoped, tag = 'scoped memory for tpu_custom_call.1']
    #allocation8 [shape = 'u8[4096]{0}', space=vmem, size = 0x1000, scoped, tag = 'input window, operand 3']
    #allocation9 [shape = 's32[2]{0}', space=sflag, size = 0x8, scoped, tag = 'scoped memory for tpu_custom_call.1']
    #allocation10 [shape = 'u8[1024]{0}', space=vmem, size = 0x400, scoped, tag = 'output window, operand 0']
    %22 = vsyncpa [#allocation6], 0
    %s23 = scalar_lea.sflag [#allocation6], 1
    %24 = vsyncpa %s23, 0
    %25 = vsyncpa [#allocation9], 0
    %s26 = scalar_lea.sflag [#allocation9], 1
    %27 = vsyncpa %s26, 0
    %28 = vsyncpa [#allocation7], 0
    %s29 = scalar_lea.sflag [#allocation7], 1
    %30 = vsyncpa %s29, 0
    loop: start=0, step=1, limit=4
    $region2: #{tpu_custom_call.1} parent=1 // loop_pre_header
      _
    $region3: #{tpu_custom_call.1} parent=1 // loop_header
      %s32 = sphi 0, %s36
      %p33 = scmp.ge.s32.totalorder %s32, 4
      %s42 = sphi 0, %s44
      %s45 = sphi 0, %s42
      %s46 = sphi 0, %s45
      %s62 = sphi 0, %s46
      %s68 = sphi 0, %s70
      %s71 = sphi 0, %s68
      %s72 = sphi 0, %s71
      %s88 = sphi 0, %s72
      %s94 = sphi 0, %s96
      %s97 = sphi 0, %s94
      %s98 = sphi 0, %s97
      %s114 = sphi 0, %s98
    $region4: #{tpu_custom_call.1} parent=1 // loop_header_branch
      %35 = sbr.rel (%p33) target = $region8
    $region5: #{tpu_custom_call.1} parent=1 // loop_body
      %s37 = ssub.s32 %s32, 1
      %s38 = ssub.s32 %s32, 2
      %s39 = sadd.s32 %s32, 1
      %s40 = ssub.s32 %s32, %s39
      %p41 = scmp.eq.s32.totalorder %s40, 0
      %s43 = sadd.s32 %s42, 1
      %s44 = scalar_select %p41, %s42, %s43
      %p47 = pneg %p41
      %p48 = scmp.eq.s32.totalorder %s32, 1
      %p49 = por %p47, %p48
      %p50 = scmp.ne.s32.totalorder %s42, %s45
      %p51 = scmp.eq.s32.totalorder %s32, 0
      %p52 = por %p50, %p51
      %p53 = scmp.ne.s32.totalorder %s42, %s45
      %p54 = scmp.eq.s32.totalorder %s37, 1
      %p55 = por %p53, %p54
      %p56 = scmp.ne.s32.totalorder %s45, %s46
      %p57 = scmp.eq.s32.totalorder %s37, 0
      %p58 = por %p56, %p57
      %p59 = scmp.ne.s32.totalorder %s45, %s46
      %p60 = scmp.eq.s32.totalorder %s38, 1
      %p61 = por %p59, %p60
      %p63 = scmp.ne.s32.totalorder %s46, %s62
      %p64 = scmp.eq.s32.totalorder %s38, 0
      %p65 = por %p63, %p64
      %s66 = ssub.s32 %s32, %s39
      %p67 = scmp.eq.s32.totalorder %s66, 0
      %s69 = sadd.s32 %s68, 1
      %s70 = scalar_select %p67, %s68, %s69
      %p73 = pneg %p67
      %p74 = scmp.eq.s32.totalorder %s32, 1
      %p75 = por %p73, %p74
      %p76 = scmp.ne.s32.totalorder %s68, %s71
      %p77 = scmp.eq.s32.totalorder %s32, 0
      %p78 = por %p76, %p77
      %p79 = scmp.ne.s32.totalorder %s68, %s71
      %p80 = scmp.eq.s32.totalorder %s37, 1
      %p81 = por %p79, %p80
      %p82 = scmp.ne.s32.totalorder %s71, %s72
      %p83 = scmp.eq.s32.totalorder %s37, 0
      %p84 = por %p82, %p83
      %p85 = scmp.ne.s32.totalorder %s71, %s72
      %p86 = scmp.eq.s32.totalorder %s38, 1
      %p87 = por %p85, %p86
      %p89 = scmp.ne.s32.totalorder %s72, %s88
      %p90 = scmp.eq.s32.totalorder %s38, 0
      %p91 = por %p89, %p90
      %s92 = ssub.s32 %s32, %s39
      %p93 = scmp.eq.s32.totalorder %s92, 0
      %s95 = sadd.s32 %s94, 1
      %s96 = scalar_select %p93, %s94, %s95
      %p99 = pneg %p93
      %p100 = scmp.eq.s32.totalorder %s32, 1
      %p101 = por %p99, %p100
      %p102 = scmp.ne.s32.totalorder %s94, %s97
      %p103 = scmp.eq.s32.totalorder %s32, 0
      %p104 = por %p102, %p103
      %p105 = scmp.ne.s32.totalorder %s94, %s97
      %p106 = scmp.eq.s32.totalorder %s37, 1
      %p107 = por %p105, %p106
      %p108 = scmp.ne.s32.totalorder %s97, %s98
      %p109 = scmp.eq.s32.totalorder %s37, 0
      %p110 = por %p108, %p109
      %p111 = scmp.ne.s32.totalorder %s97, %s98
      %p112 = scmp.eq.s32.totalorder %s38, 1
      %p113 = por %p111, %p112
      %p115 = scmp.ne.s32.totalorder %s98, %s114
      %p116 = scmp.eq.s32.totalorder %s38, 0
      %p117 = por %p115, %p116
      %p118 = scmp.le.s32.totalorder 1, %s32
      %p119 = scmp.lt.s32.totalorder %s32, 3
      %p120 = pnand %p118, %p119
      %p121 = pneg %p120
      // Predicated region
      $region9: #{tpu_custom_call.1} parent=5 // pred_check
        _
      $region10: #{tpu_custom_call.1} parent=5 // pred_check_branch
        %123 = sbr.rel (%p120) target = $region12
      $region11: #{tpu_custom_call.1} parent=5 // pred_region
        %s124 = ssub.s32 %s32, 1
      $region12: #{tpu_custom_call.1} parent=5 // pred_fallthru
        _
      %p125 = scmp.lt.s32.totalorder %s32, 2
      // Predicated region
      $region13: #{tpu_custom_call.1} parent=5 // pred_check
        %p126 = pneg %p125
      $region14: #{tpu_custom_call.1} parent=5 // pred_check_branch
        %128 = sbr.rel (%p126) target = $region16
      $region15: #{tpu_custom_call.1} parent=5 // pred_region
        // Predicated region
        $region17: #{tpu_custom_call.1} parent=15 // pred_check
          %p129 = pneg %p52
        $region18: #{tpu_custom_call.1} parent=15 // pred_check_branch
          %131 = sbr.rel (%p129) target = $region20
        $region19: #{tpu_custom_call.1} parent=15 // pred_region
          %s132 = sand.u32 %s42, 1
          %s133 = scalar_lea.sflag [#allocation6], %s132
          %s134 = sand.u32 %s42, 1
          %s135 = smul.addr %s134, 8
          %s136 = scalar_lea.vmem [#allocation5], %s135
          %138 = vsyncadd %s133, 0
          %s139 = smul.addr %s32, 4
          %s140 = smul.addr %s139, 2
          %s141 = scalar_lea.hbm %s2, %s140
          %s142 = sshll.u32 %s141, 4
          %s143 = int_to_ptr.hbm [resolvable:$true] %s142
          %s144 = sshll.u32 %s136, 4
          %s145 = int_to_ptr.vmem [resolvable:$true] %s144
          %150 = dma.hbm_to_vmem [thread:$0]  %s143, 128, %s145, %s133, 32, 32, 2
        $region20: #{tpu_custom_call.1} parent=15 // pred_fallthru
          _
        // Predicated region
        $region21: #{tpu_custom_call.1} parent=15 // pred_check
          %p151 = pneg %p78
        $region22: #{tpu_custom_call.1} parent=15 // pred_check_branch
          %153 = sbr.rel (%p151) target = $region24
        $region23: #{tpu_custom_call.1} parent=15 // pred_region
          %s154 = sand.u32 %s68, 1
          %s155 = scalar_lea.sflag [#allocation9], %s154
          %s156 = sand.u32 %s68, 1
          %s157 = smul.addr %s156, 4
          %s158 = scalar_lea.vmem [#allocation8], %s157
          %160 = vsyncadd %s155, 0
          %s161 = smul.addr %s32, 4
          %s162 = scalar_lea.hbm %s3, %s161
          %s164 = sshll.u32 %s162, 4
          %s165 = int_to_ptr.hbm [resolvable:$true] %s164
          %s166 = sshll.u32 %s158, 4
          %s167 = int_to_ptr.vmem [resolvable:$true] %s166
          %169 = dma.hbm_to_vmem [thread:$0]  %s165, 64, %s167, %s155
        $region24: #{tpu_custom_call.1} parent=15 // pred_fallthru
          _
      $region16: #{tpu_custom_call.1} parent=5 // pred_fallthru
        _
      %p170 = scmp.le.s32.totalorder 1, %s32
      %p171 = scmp.lt.s32.totalorder %s32, 3
      %p172 = pnand %p170, %p171
      %p173 = pneg %p172
      // Predicated region
      $region25: #{tpu_custom_call.1} parent=5 // pred_check
        _
      $region26: #{tpu_custom_call.1} parent=5 // pred_check_branch
        %175 = sbr.rel (%p172) target = $region28
      $region27: #{tpu_custom_call.1} parent=5 // pred_region
        %s176 = ssub.s32 %s32, 1
        %s177 = sand.u32 %s45, 1
        %s178 = scalar_lea.sflag [#allocation6], %s177
        %s179 = sand.u32 %s45, 1
        %s180 = smul.addr %s179, 8
        %s181 = scalar_lea.vmem [#allocation5], %s180
        // Predicated region
        $region29: #{tpu_custom_call.1} parent=27 // pred_check
          %p182 = pneg %p58
        $region30: #{tpu_custom_call.1} parent=27 // pred_check_branch
          %184 = sbr.rel (%p182) target = $region32
        $region31: #{tpu_custom_call.1} parent=27 // pred_region
          %186 = dma.done %s178, 128
        $region32: #{tpu_custom_call.1} parent=27 // pred_fallthru
          _
        %s187 = sand.u32 %s71, 1
        %s188 = scalar_lea.sflag [#allocation9], %s187
        %s189 = sand.u32 %s71, 1
        %s190 = smul.addr %s189, 4
        %s191 = scalar_lea.vmem [#allocation8], %s190
        // Predicated region
        $region33: #{tpu_custom_call.1} parent=27 // pred_check
          %p192 = pneg %p84
        $region34: #{tpu_custom_call.1} parent=27 // pred_check_branch
          %194 = sbr.rel (%p192) target = $region36
        $region35: #{tpu_custom_call.1} parent=27 // pred_region
          %196 = dma.done %s188, 64
        $region36: #{tpu_custom_call.1} parent=27 // pred_fallthru
          _
        %s197 = sand.u32 %s45, 1
        %s198 = scalar_lea.sflag [#allocation6], %s197
        %s199 = sand.u32 %s45, 1
        %s200 = smul.addr %s199, 8
        %s201 = scalar_lea.vmem [#allocation5], %s200
        %p202 = pneg %p58
        %p203 = pneg %p55
        %s204 = sand.u32 %s71, 1
        %s205 = scalar_lea.sflag [#allocation9], %s204
        %s206 = sand.u32 %s71, 1
        %s207 = smul.addr %s206, 4
        %s208 = scalar_lea.vmem [#allocation8], %s207
        %p209 = pneg %p84
        %p210 = pneg %p81
        %p211 = pneg %p110
        %p212 = pneg %p107
        %s213 = sand.u32 %s97, 1
        %s214 = scalar_lea.sflag [#allocation7], %s213
        %s215 = sand.u32 %s97, 1
        %s216 = scalar_lea.vmem [#allocation10], %s215
        %v217 = vlaneseq
        %v218 = vand.u32 %v217, 127
        %s219 = smul.u32 %s37, 128
        %s220 = sld [smem:[#allocation3 + %s219]]
        %s221 = scalar_lea.vmem %s181, %s220 [#allocation5]
        %v222 = vld [vmem:[%s221] sm:$0x1]
        %v223 = vld [vmem:[%s221 + $0x2] sm:$0x1]
        %v224 = vld [vmem:[%s221 + $0x4] sm:$0x1]
        %v225 = vld [vmem:[%s221 + $0x6] sm:$0x1]
        %s226 = sld [smem:[#allocation4 + %s219]]
        %v227 = vstv %s226
        %vm228 = vcmp.eq.s32.totalorder %v218, %v227
        %v229 = vsel %vm228, 1, 0
        %v230 = vcvt.s32.f32 %v229
        %v231 = vmul.f32 %v222, %v230
        %v232 = vmul.f32 %v223, %v230
        %v233 = vmul.f32 %v224, %v230
        %v234 = vmul.f32 %v225, %v230
        %v239 = vrot.slane %v232, 7
        %vm240 = vcmask 1041409
        %v241 = vsel %vm240, %v239, %v231
        %v242 = vrot.slane %v233, 6
        %vm243 = vcmask 1042434
        %v244 = vsel %vm243, %v242, %v241
        %v245 = vrot.slane %v234, 5
        %vm246 = vcmask 1043459
        %v247 = vsel %vm246, %v245, %v244
        %vm249 = vcmask 1043456
        %v250 = vsel %vm249, %v247, 0.0
        %251 = vadd.xlane.f32.xlu0 %v250
        %v252 = vpop.xlane.xlu0 %251
        %vm253 = vcmp.eq.s32.totalorder %v218, 0
        %v254 = vsel %vm253, 1, 0
        %v255 = vcvt.s32.f32 %v254
        %v256 = vmul.f32 %v252, %v255
        %v257 = vadd.f32 %v256, 0.0
        %s258 = sadd.s32 %s219, 1
        %s259 = sld [smem:[#allocation3 + %s258]]
        %s260 = scalar_lea.vmem %s181, %s259 [#allocation5]
        %v261 = vld [vmem:[%s260] sm:$0x1]
        %v262 = vld [vmem:[%s260 + $0x2] sm:$0x1]
        %v263 = vld [vmem:[%s260 + $0x4] sm:$0x1]
        %v264 = vld [vmem:[%s260 + $0x6] sm:$0x1]
        %s265 = sld [smem:[#allocation4 + %s258]]
        %v266 = vstv %s265
        %vm267 = vcmp.eq.s32.totalorder %v218, %v266
        %v268 = vsel %vm267, 1, 0
        %v269 = vcvt.s32.f32 %v268
        %v270 = vmul.f32 %v261, %v269
        %v271 = vmul.f32 %v262, %v269
        %v272 = vmul.f32 %v263, %v269
        %v273 = vmul.f32 %v264, %v269
        %v278 = vrot.slane %v271, 7
        %v279 = vsel %vm240, %v278, %v270
        %v280 = vrot.slane %v272, 6
        %v281 = vsel %vm243, %v280, %v279
        %v282 = vrot.slane %v273, 5
        %v283 = vsel %vm246, %v282, %v281
        %v285 = vsel %vm249, %v283, 0.0
        %286 = vadd.xlane.f32.xlu0 %v285
        %v287 = vpop.xlane.xlu0 %286
        %vm288 = vcmp.eq.s32.totalorder %v218, 1
        %v289 = vsel %vm288, 1, 0
        %v290 = vcvt.s32.f32 %v289
        %v291 = vmul.f32 %v287, %v290
        %v292 = vadd.f32 %v257, %v291
        %s293 = sadd.s32 %s219, 2
        %s294 = sld [smem:[#allocation3 + %s293]]
        %s295 = scalar_lea.vmem %s181, %s294 [#allocation5]
        %v296 = vld [vmem:[%s295] sm:$0x1]
        %v297 = vld [vmem:[%s295 + $0x2] sm:$0x1]
        %v298 = vld [vmem:[%s295 + $0x4] sm:$0x1]
        %v299 = vld [vmem:[%s295 + $0x6] sm:$0x1]
        %s300 = sld [smem:[#allocation4 + %s293]]
        %v301 = vstv %s300
        %vm302 = vcmp.eq.s32.totalorder %v218, %v301
        %v303 = vsel %vm302, 1, 0
        %v304 = vcvt.s32.f32 %v303
        %v305 = vmul.f32 %v296, %v304
        %v306 = vmul.f32 %v297, %v304
        %v307 = vmul.f32 %v298, %v304
        %v308 = vmul.f32 %v299, %v304
        %v313 = vrot.slane %v306, 7
        %v314 = vsel %vm240, %v313, %v305
        %v315 = vrot.slane %v307, 6
        %v316 = vsel %vm243, %v315, %v314
        %v317 = vrot.slane %v308, 5
        %v318 = vsel %vm246, %v317, %v316
        %v320 = vsel %vm249, %v318, 0.0
        %321 = vadd.xlane.f32.xlu0 %v320
        %v322 = vpop.xlane.xlu0 %321
        %vm323 = vcmp.eq.s32.totalorder %v218, 2
        %v324 = vsel %vm323, 1, 0
        %v325 = vcvt.s32.f32 %v324
        %v326 = vmul.f32 %v322, %v325
        %v327 = vadd.f32 %v292, %v326
        %s328 = sadd.s32 %s219, 3
        %s329 = sld [smem:[#allocation3 + %s328]]
        %s330 = scalar_lea.vmem %s181, %s329 [#allocation5]
        %v331 = vld [vmem:[%s330] sm:$0x1]
        %v332 = vld [vmem:[%s330 + $0x2] sm:$0x1]
        %v333 = vld [vmem:[%s330 + $0x4] sm:$0x1]
        %v334 = vld [vmem:[%s330 + $0x6] sm:$0x1]
        %s335 = sld [smem:[#allocation4 + %s328]]
        %v336 = vstv %s335
        %vm337 = vcmp.eq.s32.totalorder %v218, %v336
        %v338 = vsel %vm337, 1, 0
        %v339 = vcvt.s32.f32 %v338
        %v340 = vmul.f32 %v331, %v339
        %v341 = vmul.f32 %v332, %v339
        %v342 = vmul.f32 %v333, %v339
        %v343 = vmul.f32 %v334, %v339
        %v348 = vrot.slane %v341, 7
        %v349 = vsel %vm240, %v348, %v340
        %v350 = vrot.slane %v342, 6
        %v351 = vsel %vm243, %v350, %v349
        %v352 = vrot.slane %v343, 5
        %v353 = vsel %vm246, %v352, %v351
        %v355 = vsel %vm249, %v353, 0.0
        %356 = vadd.xlane.f32.xlu0 %v355
        %v357 = vpop.xlane.xlu0 %356
        %vm358 = vcmp.eq.s32.totalorder %v218, 3
        %v359 = vsel %vm358, 1, 0
        %v360 = vcvt.s32.f32 %v359
        %v361 = vmul.f32 %v357, %v360
        %v362 = vadd.f32 %v327, %v361
        %s363 = sadd.s32 %s219, 4
        %s364 = sld [smem:[#allocation3 + %s363]]
        %s365 = scalar_lea.vmem %s181, %s364 [#allocation5]
        %v366 = vld [vmem:[%s365] sm:$0x1]
        %v367 = vld [vmem:[%s365 + $0x2] sm:$0x1]
        %v368 = vld [vmem:[%s365 + $0x4] sm:$0x1]
        %v369 = vld [vmem:[%s365 + $0x6] sm:$0x1]
        %s370 = sld [smem:[#allocation4 + %s363]]
        %v371 = vstv %s370
        %vm372 = vcmp.eq.s32.totalorder %v218, %v371
        %v373 = vsel %vm372, 1, 0
        %v374 = vcvt.s32.f32 %v373
        %v375 = vmul.f32 %v366, %v374
        %v376 = vmul.f32 %v367, %v374
        %v377 = vmul.f32 %v368, %v374
        %v378 = vmul.f32 %v369, %v374
        %v383 = vrot.slane %v376, 7
        %v384 = vsel %vm240, %v383, %v375
        %v385 = vrot.slane %v377, 6
        %v386 = vsel %vm243, %v385, %v384
        %v387 = vrot.slane %v378, 5
        %v388 = vsel %vm246, %v387, %v386
        %v390 = vsel %vm249, %v388, 0.0
        %391 = vadd.xlane.f32.xlu0 %v390
        %v392 = vpop.xlane.xlu0 %391
        %vm393 = vcmp.eq.s32.totalorder %v218, 4
        %v394 = vsel %vm393, 1, 0
        %v395 = vcvt.s32.f32 %v394
        %v396 = vmul.f32 %v392, %v395
        %v397 = vadd.f32 %v362, %v396
        %s398 = sadd.s32 %s219, 5
        %s399 = sld [smem:[#allocation3 + %s398]]
        %s400 = scalar_lea.vmem %s181, %s399 [#allocation5]
        %v401 = vld [vmem:[%s400] sm:$0x1]
        %v402 = vld [vmem:[%s400 + $0x2] sm:$0x1]
        %v403 = vld [vmem:[%s400 + $0x4] sm:$0x1]
        %v404 = vld [vmem:[%s400 + $0x6] sm:$0x1]
        %s405 = sld [smem:[#allocation4 + %s398]]
        %v406 = vstv %s405
        %vm407 = vcmp.eq.s32.totalorder %v218, %v406
        %v408 = vsel %vm407, 1, 0
        %v409 = vcvt.s32.f32 %v408
        %v410 = vmul.f32 %v401, %v409
        %v411 = vmul.f32 %v402, %v409
        %v412 = vmul.f32 %v403, %v409
        %v413 = vmul.f32 %v404, %v409
        %v418 = vrot.slane %v411, 7
        %v419 = vsel %vm240, %v418, %v410
        %v420 = vrot.slane %v412, 6
        %v421 = vsel %vm243, %v420, %v419
        %v422 = vrot.slane %v413, 5
        %v423 = vsel %vm246, %v422, %v421
        %v425 = vsel %vm249, %v423, 0.0
        %426 = vadd.xlane.f32.xlu0 %v425
        %v427 = vpop.xlane.xlu0 %426
        %vm428 = vcmp.eq.s32.totalorder %v218, 5
        %v429 = vsel %vm428, 1, 0
        %v430 = vcvt.s32.f32 %v429
        %v431 = vmul.f32 %v427, %v430
        %v432 = vadd.f32 %v397, %v431
        %s433 = sadd.s32 %s219, 6
        %s434 = sld [smem:[#allocation3 + %s433]]
        %s435 = scalar_lea.vmem %s181, %s434 [#allocation5]
        %v436 = vld [vmem:[%s435] sm:$0x1]
        %v437 = vld [vmem:[%s435 + $0x2] sm:$0x1]
        %v438 = vld [vmem:[%s435 + $0x4] sm:$0x1]
        %v439 = vld [vmem:[%s435 + $0x6] sm:$0x1]
        %s440 = sld [smem:[#allocation4 + %s433]]
        %v441 = vstv %s440
        %vm442 = vcmp.eq.s32.totalorder %v218, %v441
        %v443 = vsel %vm442, 1, 0
        %v444 = vcvt.s32.f32 %v443
        %v445 = vmul.f32 %v436, %v444
        %v446 = vmul.f32 %v437, %v444
        %v447 = vmul.f32 %v438, %v444
        %v448 = vmul.f32 %v439, %v444
        %v453 = vrot.slane %v446, 7
        %v454 = vsel %vm240, %v453, %v445
        %v455 = vrot.slane %v447, 6
        %v456 = vsel %vm243, %v455, %v454
        %v457 = vrot.slane %v448, 5
        %v458 = vsel %vm246, %v457, %v456
        %v460 = vsel %vm249, %v458, 0.0
        %461 = vadd.xlane.f32.xlu0 %v460
        %v462 = vpop.xlane.xlu0 %461
        %vm463 = vcmp.eq.s32.totalorder %v218, 6
        %v464 = vsel %vm463, 1, 0
        %v465 = vcvt.s32.f32 %v464
        %v466 = vmul.f32 %v462, %v465
        %v467 = vadd.f32 %v432, %v466
        %s468 = sadd.s32 %s219, 7
        %s469 = sld [smem:[#allocation3 + %s468]]
        %s470 = scalar_lea.vmem %s181, %s469 [#allocation5]
        %v471 = vld [vmem:[%s470] sm:$0x1]
        %v472 = vld [vmem:[%s470 + $0x2] sm:$0x1]
        %v473 = vld [vmem:[%s470 + $0x4] sm:$0x1]
        %v474 = vld [vmem:[%s470 + $0x6] sm:$0x1]
        %s475 = sld [smem:[#allocation4 + %s468]]
        %v476 = vstv %s475
        %vm477 = vcmp.eq.s32.totalorder %v218, %v476
        %v478 = vsel %vm477, 1, 0
        %v479 = vcvt.s32.f32 %v478
        %v480 = vmul.f32 %v471, %v479
        %v481 = vmul.f32 %v472, %v479
        %v482 = vmul.f32 %v473, %v479
        %v483 = vmul.f32 %v474, %v479
        %v488 = vrot.slane %v481, 7
        %v489 = vsel %vm240, %v488, %v480
        %v490 = vrot.slane %v482, 6
        %v491 = vsel %vm243, %v490, %v489
        %v492 = vrot.slane %v483, 5
        %v493 = vsel %vm246, %v492, %v491
        %v495 = vsel %vm249, %v493, 0.0
        %496 = vadd.xlane.f32.xlu0 %v495
        %v497 = vpop.xlane.xlu0 %496
        %vm498 = vcmp.eq.s32.totalorder %v218, 7
        %v499 = vsel %vm498, 1, 0
        %v500 = vcvt.s32.f32 %v499
        %v501 = vmul.f32 %v497, %v500
        %v502 = vadd.f32 %v467, %v501
        %v503 = vld [vmem:[%s191] sm:$0xf]
        %v504 = vsub.f32 %v502, %v503
        %v505 = vand.u32 2147483647, %v504
        %vm506 = vcmask 60416
        %v507 = vsel %vm506, %v505, 0.0
        %v508 = vrot.slane %v507, 4
        %v509 = vadd.f32 %v507, %v508
        %v510 = vrot.slane %v509, 2
        %v511 = vadd.f32 %v509, %v510
        %v512 = vrot.slane %v511, 1
        %v513 = vadd.f32 %v511, %v512
        %vm514 = vcmask 57344
        %515 = vst.msk [vmem:[%s216] sm:$0x1] %vm514, %v513
        %s516 = sand.u32 %s97, 1
        %s517 = scalar_lea.sflag [#allocation7], %s516
        %s518 = sand.u32 %s97, 1
        %s519 = scalar_lea.vmem [#allocation10], %s518
        // Predicated region
        $region37: #{tpu_custom_call.1} parent=27 // pred_check
          %p520 = pneg %p107
        $region38: #{tpu_custom_call.1} parent=27 // pred_check_branch
          %522 = sbr.rel (%p520) target = $region40
        $region39: #{tpu_custom_call.1} parent=27 // pred_region
          %524 = vsyncadd %s517, 0
          %s525 = scalar_lea.hbm %s4, %s37
          %s527 = sshll.u32 %s519, 4
          %s528 = int_to_ptr.vmem [resolvable:$true] %s527
          %s529 = sshll.u32 %s525, 4
          %s530 = int_to_ptr.hbm [resolvable:$true] %s529
          %532 = dma.vmem_to_hbm [thread:$0]  %s528, 16, %s530, %s517
        $region40: #{tpu_custom_call.1} parent=27 // pred_fallthru
          _
      $region28: #{tpu_custom_call.1} parent=5 // pred_fallthru
        _
      %p533 = scmp.le.s32.totalorder 2, %s32
      // Predicated region
      $region41: #{tpu_custom_call.1} parent=5 // pred_check
        %p534 = pneg %p533
      $region42: #{tpu_custom_call.1} parent=5 // pred_check_branch
        %536 = sbr.rel (%p534) target = $region44
      $region43: #{tpu_custom_call.1} parent=5 // pred_region
        %s537 = ssub.s32 %s32, 2
        // Predicated region
        $region45: #{tpu_custom_call.1} parent=43 // pred_check
          %p538 = pneg %p113
        $region46: #{tpu_custom_call.1} parent=43 // pred_check_branch
          %540 = sbr.rel (%p538) target = $region48
        $region47: #{tpu_custom_call.1} parent=43 // pred_region
          %s541 = sand.u32 %s98, 1
          %s542 = scalar_lea.sflag [#allocation7], %s541
          %s543 = sand.u32 %s98, 1
          %s544 = scalar_lea.vmem [#allocation10], %s543
          %546 = dma.done %s542, 16
        $region48: #{tpu_custom_call.1} parent=43 // pred_fallthru
          _
      $region44: #{tpu_custom_call.1} parent=5 // pred_fallthru
        _
    $region6: #{tpu_custom_call.1} parent=1 // loop_footer
      %s36 = sadd.s32 1, %s32
    $region7: #{tpu_custom_call.1} parent=1 // loop_footer_branch
      %31 = sbr.rel target = $region3
    $region8: #{tpu_custom_call.1} parent=1 // loop_exit
      _
    %547 = vsyncpa [#allocation6], 1
    %s548 = scalar_lea.sflag [#allocation6], 1
    %549 = vsyncpa %s548, 1
    %550 = vsyncpa [#allocation9], 1
    %s551 = scalar_lea.sflag [#allocation9], 1
    %552 = vsyncpa %s551, 1
    %553 = vsyncpa [#allocation7], 1
    %s554 = scalar_lea.sflag [#allocation7], 1
    %555 = vsyncpa %s554, 1

</llo_original>
